<compile_context>
chip_gen: v7x
topology: tpu7x:2x2x1
jax: 0.10.0
libtpu: 0.0.40
codegen_flags: <defaults>
</compile_context>

<pallas_src>
import jax
import jax.numpy as jnp
from jax.experimental import pallas as pl
from jax.experimental.pallas import tpu as pltpu

_LANES = 128
_TARGET_TILE_BYTES = 4 << 20     # ~4 MiB of x per grid step (HBM bytes)
_MAX_TILE_VMEM_BYTES = 6 << 20   # per-buffer VMEM cap incl. lane padding (x2 for double buffer)
_VMEM_LIMIT_BYTES = 48 << 20     # headroom, still below v7x's 64 MiB physical VMEM


def _round_up(x, m):
    return ((x + m - 1) // m) * m


def _choose_tiles(batch, dim, itemsize):
    """Byte-targeted (TM, TK) tiles; TK == D unless D is huge, TM multiple of 128 when possible."""
    def lanepad(d):  # VMEM lane padding for minor dims < 128 / partial tiles
        return _round_up(d, _LANES)

    # Feature (reduction) tile: keep full D if a 128-row band of full D fits the per-buffer
    # budget; otherwise split D into lane-aligned chunks (adds a reduction grid axis).
    if _LANES * lanepad(dim) * itemsize <= _MAX_TILE_VMEM_BYTES:
        tk = dim
    else:
        tk = max((_MAX_TILE_VMEM_BYTES // (_LANES * itemsize)) // _LANES * _LANES, _LANES)

    # Batch tile: target ~4 MiB of HBM bytes per step, clamp to the lane-padded VMEM budget,
    # keep it a multiple of 128 for lane-dense (unmasked) output stores.
    tm = _TARGET_TILE_BYTES // max(tk * itemsize, 1)
    tm = min(tm, _MAX_TILE_VMEM_BYTES // (lanepad(tk) * itemsize))
    tm = max((tm // _LANES) * _LANES, _LANES)
    if batch < _LANES:
        tm = batch                                   # single full-dim block (tiny masked store)
    else:
        tm = min(tm, (batch // _LANES) * _LANES)     # 128-aligned; last block may be partial
    return tm, tk


def _make_kernel(d_total, tk, num_k):
    """Kernel: per batch tile, accumulate sum_d x[r,d]*w[d] over D blocks, add bias at the end."""
    masked = (d_total % tk) != 0   # last D block is partial -> mask garbage lanes

    def kernel(x_ref, w_ref, b_ref, o_ref, acc_ref):
        k = pl.program_id(1)

        @pl.when(k == 0)
        def _():
            acc_ref[...] = jnp.zeros_like(acc_ref)

        n_full = tk // _LANES
        rem = tk - n_full * _LANES

        def chunk_prod(lo, width):
            xc = x_ref[:, lo:lo + width].astype(jnp.float32)
            wc = w_ref[:, lo:lo + width].astype(jnp.float32)
            prod = xc * wc
            if masked:
                col = jax.lax.broadcasted_iota(jnp.int32, prod.shape, 1) + (k * tk + lo)
                prod = jnp.where(col < d_total, prod, 0.0)
            return prod

        # Accumulate 128-lane-wide partial products with VPU adds; one XLU lane-reduce at the end.
        pieces = []
        vacc = None
        for c in range(n_full):
            p = chunk_prod(c * _LANES, _LANES)
            vacc = p if vacc is None else vacc + p
        if vacc is not None:
            pieces.append(jnp.sum(vacc, axis=-1))
        if rem:
            pieces.append(jnp.sum(chunk_prod(n_full * _LANES, rem), axis=-1))
        partial = pieces[0]
        for p in pieces[1:]:
            partial = partial + p

        acc_ref[...] += partial[None, :]

        @pl.when(k == num_k - 1)
        def _():
            o_ref[...] = (acc_ref[...] + b_ref[0, 0]).astype(o_ref.dtype)

    return kernel


def _linear_pallas(x, weight, bias):
    B, D = x.shape
    itemsize = jnp.dtype(x.dtype).itemsize
    tm, tk = _choose_tiles(B, D, itemsize)

    grid_m = pl.cdiv(B, tm)
    grid_k = pl.cdiv(D, tk)
    bp = grid_m * tm                     # padded output width only (x itself is NOT padded)

    b2d = bias.reshape(1, 1).astype(jnp.float32)
    kernel = _make_kernel(D, tk, grid_k)

    out = pl.pallas_call(
        kernel,
        out_shape=jax.ShapeDtypeStruct((1, bp), x.dtype),
        grid_spec=pltpu.PrefetchScalarGridSpec(
            num_scalar_prefetch=0,
            grid=(grid_m, grid_k),
            in_specs=[
                pl.BlockSpec((tm, tk), lambda i, k: (i, k)),            # x: streamed batch/D tiles
                pl.BlockSpec((1, tk), lambda i, k: (0, k)),             # weight (natural (1, D))
                pl.BlockSpec(memory_space=pltpu.MemorySpace.SMEM),      # bias scalar in SMEM
            ],
            out_specs=pl.BlockSpec((1, tm), lambda i, k: (0, i)),       # lane-dense output slab
            scratch_shapes=[pltpu.VMEM((1, tm), jnp.float32)],          # per-tile f32 accumulator
        ),
        compiler_params=pltpu.CompilerParams(
            dimension_semantics=("parallel", "arbitrary"),
            vmem_limit_bytes=_VMEM_LIMIT_BYTES,
        ),
    )(x, weight, b2d)

    return out.reshape(bp, 1)[:B]


def simple_linear_regression(x, weight, bias, *, force_pallas=False):
    """y = x @ weight.T + bias, matching torch.nn.Linear(input_dim, 1).

    x: (B, D), weight: (1, D) (PyTorch layout), bias: (1,) -> (B, 1).
    Inputs smaller than ~1 MiB are left to XLA fusion unless force_pallas.
    """
    if not force_pallas and x.size * jnp.dtype(x.dtype).itemsize < (1 << 20):
        return x @ weight.T + bias
    return _linear_pallas(x, weight, bias)


def init_linear_params(key, input_dim):
    """Deterministic init mimicking torch.nn.Linear: U(-1/sqrt(D), 1/sqrt(D))."""
    k_w, k_b = jax.random.split(key)
    bound = 1.0 / jnp.sqrt(jnp.float32(input_dim))
    weight = jax.random.uniform(k_w, (1, input_dim), jnp.float32, -bound, bound)
    bias = jax.random.uniform(k_b, (1,), jnp.float32, -bound, bound)
    return weight, bias


if __name__ == "__main__":
    batch, input_dim = 8, 32

    key = jax.random.PRNGKey(0)
    k_x, k_p = jax.random.split(key)
    x = jax.random.normal(k_x, (batch, input_dim), jnp.float32)
    weight, bias = init_linear_params(k_p, input_dim)

    # force_pallas=True so the kernel path (not the tiny-input XLA fallback) is exercised.
    y = simple_linear_regression(x, weight, bias, force_pallas=True)
    jax.block_until_ready(y)

    y_ref = x @ weight.T + bias
    assert y.shape == (batch, 1)
    assert jnp.allclose(y, y_ref, atol=1e-5, rtol=1e-5)

    print("KERNEL_OK")
</pallas_src>

<mosaic_0001>
module attributes {stable_mosaic.version = 11 : i64} {
  func.func @kernel(%arg0: i32, %arg1: i32, %arg2: memref<8x32xf32, #tpu.memory_space<vmem>>, %arg3: memref<1x32xf32, #tpu.memory_space<vmem>>, %arg4: memref<1x1xf32, #tpu.memory_space<smem>>, %arg5: memref<1x8xf32, #tpu.memory_space<vmem>>, %arg6: memref<1x8xf32, #tpu.memory_space<vmem>>) attributes {dimension_semantics = [#tpu.dimension_semantics<parallel>, #tpu.dimension_semantics<arbitrary>], iteration_bounds = array<i64: 1, 1>, scalar_prefetch = 0 : i64, scratch_operands = 1 : i64, tpu.core_type = #tpu.core_type<tc>, window_params = [{transform_indices = @transform_0, window_bounds = array<i64: 8, 32>}, {transform_indices = @transform_1, window_bounds = array<i64: 1, 32>}, {transform_indices = @transform_2, window_bounds = array<i64: 1, 1>}, {transform_indices = @transform_3, window_bounds = array<i64: 1, 8>}]} {
    %c0_i32 = arith.constant 0 : i32
    %0 = arith.cmpi eq, %arg1, %c0_i32 : i32
    %1 = arith.extui %0 : i1 to i32
    %c0_i32_0 = arith.constant 0 : i32
    %2 = arith.cmpi ne, %1, %c0_i32_0 : i32
    scf.if %2 {
      %cst_10 = arith.constant 0.000000e+00 : f32
      %15 = vector.broadcast %cst_10 : f32 to vector<1x8xf32>
      %c0_11 = arith.constant 0 : index
      %c0_12 = arith.constant 0 : index
      %16 = vector.load %arg6[%c0_11, %c0_12] : memref<1x8xf32, #tpu.memory_space<vmem>>, vector<1x8xf32>
      tpu.vector_store %arg6[%c0_11, %c0_12], %15 {strides = array<i32>} : memref<1x8xf32, #tpu.memory_space<vmem>>, vector<1x8xf32>,
    } else {
    }
    %c0 = arith.constant 0 : index
    %c0_1 = arith.constant 0 : index
    %3 = vector.load %arg2[%c0, %c0_1] : memref<8x32xf32, #tpu.memory_space<vmem>>, vector<8x32xf32>
    %c0_2 = arith.constant 0 : index
    %c0_3 = arith.constant 0 : index
    %4 = vector.load %arg3[%c0_2, %c0_3] : memref<1x32xf32, #tpu.memory_space<vmem>>, vector<1x32xf32>
    %5 = vector.broadcast %4 : vector<1x32xf32> to vector<8x32xf32>
    %6 = arith.mulf %3, %5 : vector<8x32xf32>
    %cst = arith.constant dense<0.000000e+00> : vector<8xf32>
    %7 = vector.multi_reduction <add>, %6, %cst [1] : vector<8x32xf32> to vector<8xf32>
    %c0_4 = arith.constant 0 : index
    %c0_5 = arith.constant 0 : index
    %8 = vector.load %arg6[%c0_4, %c0_5] : memref<1x8xf32, #tpu.memory_space<vmem>>, vector<1x8xf32>
    %9 = vector.shape_cast %7 : vector<8xf32> to vector<1x8xf32>
    %10 = arith.addf %8, %9 : vector<1x8xf32>
    %c0_6 = arith.constant 0 : index
    %c0_7 = arith.constant 0 : index
    %11 = vector.load %arg6[%c0_6, %c0_7] : memref<1x8xf32, #tpu.memory_space<vmem>>, vector<1x8xf32>
    tpu.vector_store %arg6[%c0_6, %c0_7], %10 {strides = array<i32>} : memref<1x8xf32, #tpu.memory_space<vmem>>, vector<1x8xf32>,
    %c0_i32_8 = arith.constant 0 : i32
    %12 = arith.cmpi eq, %arg1, %c0_i32_8 : i32
    %13 = arith.extui %12 : i1 to i32
    %c0_i32_9 = arith.constant 0 : i32
    %14 = arith.cmpi ne, %13, %c0_i32_9 : i32
    scf.if %14 {
      %c0_10 = arith.constant 0 : index
      %c0_11 = arith.constant 0 : index
      %15 = vector.load %arg6[%c0_10, %c0_11] : memref<1x8xf32, #tpu.memory_space<vmem>>, vector<1x8xf32>
      %c0_12 = arith.constant 0 : index
      %c0_13 = arith.constant 0 : index
      %16 = memref.load %arg4[%c0_12, %c0_13] : memref<1x1xf32, #tpu.memory_space<smem>>
      %17 = vector.broadcast %16 : f32 to vector<1x8xf32>
      %18 = arith.addf %15, %17 : vector<1x8xf32>
      %c0_14 = arith.constant 0 : index
      %c0_15 = arith.constant 0 : index
      %19 = vector.load %arg5[%c0_14, %c0_15] : memref<1x8xf32, #tpu.memory_space<vmem>>, vector<1x8xf32>
      tpu.vector_store %arg5[%c0_14, %c0_15], %18 {strides = array<i32>} : memref<1x8xf32, #tpu.memory_space<vmem>>, vector<1x8xf32>,
    } else {
    }
    return
  }
  func.func @transform_0(%arg0: i32, %arg1: i32) -> (i32, i32) {
    %c0_i32 = arith.constant 0 : i32
    return %arg0, %arg1 : i32, i32
  }
  func.func @transform_1(%arg0: i32, %arg1: i32) -> (i32, i32) {
    %c0_i32 = arith.constant 0 : i32
    %c0_i32_0 = arith.constant 0 : i32
    return %c0_i32, %arg1 : i32, i32
  }
  func.func @transform_2(%arg0: i32, %arg1: i32) -> (i32, i32) {
    %c0_i32 = arith.constant 0 : i32
    %c0_i32_0 = arith.constant 0 : i32
    %c0_i32_1 = arith.constant 0 : i32
    return %c0_i32, %c0_i32_0 : i32, i32
  }
  func.func @transform_3(%arg0: i32, %arg1: i32) -> (i32, i32) {
    %c0_i32 = arith.constant 0 : i32
    %c0_i32_0 = arith.constant 0 : i32
    return %c0_i32, %arg0 : i32, i32
  }
}

</mosaic_0001>

<llo_original>
// kernel: tpu_custom_call.1
$region0: #{tpu_custom_call.1}
  #allocation0 [shape = 'u32[]', space=smem, size = 0x4, offset = 0x4, fixed_abs, tag = 'smem constant byte address 0x4 - core index']
  #allocation1 [shape = 'u32[144,128]{1,0:T(1,128)}', space=vmem, size = 0x12000, scoped, tag = 'internal scratch']
  #allocation2 [shape = 'f32[1,8]{1,0:T(1,128)}', space=vmem, size = 0x200, scoped, tag = 'scratch operand']
  #allocation3 [shape = 'f32[1,1]{1,0:T(1,128)S(6)}', space=smem, size = 0x200, scoped, tag = 'scoped memory for tpu_custom_call.1']
  %s0 = inlined_call_operand.hbm [shape: f32[8,32], index: 0, kind: input, shape index: {}]
  %s1 = inlined_call_operand.vmem [shape: f32[1,32], index: 1, kind: input, shape index: {}]
  %s2 = inlined_call_operand.<no memory space> [shape: f32[1,1], index: 2, kind: input, shape index: {}]
  %s3 = inlined_call_operand.hbm [shape: f32[1,8], index: 3, kind: output, shape index: {}]
  %s4 = sld [smem:[#allocation0]]
  $region34: #{tpu_custom_call.1} parent=0
    _
  %s6 = ssub.s32 1, %s4
  %s7 = scalar_select 0, %s6, %s4
  %8 = sst [smem:[#allocation3]] %s2
  $region1: #{tpu_custom_call.1} parent=0
    #allocation4 [shape = 'u8[4096]{0}', space=vmem, size = 0x1000, scoped, tag = 'input window, operand 0, single buffered']
    #allocation5 [shape = 's32[1]{0}', space=sflag, size = 0x4, scoped, tag = 'scoped memory for tpu_custom_call.1']
    #allocation6 [shape = 's32[1]{0}', space=sflag, size = 0x4, scoped, tag = 'scoped memory for tpu_custom_call.1']
    #allocation7 [shape = 'u8[512]{0}', space=vmem, size = 0x400, scoped, tag = 'output window, operand 0, single buffered']
    %9 = vsyncpa [#allocation5], 0
    %10 = vsyncpa [#allocation6], 0
    // Predicated region
    $region2: #{tpu_custom_call.1} parent=1 // pred_check
      _
    $region3: #{tpu_custom_call.1} parent=1 // pred_check_branch
      %12 = sbr.rel (0) target = $region5
    $region4: #{tpu_custom_call.1} parent=1 // pred_region
      %s14 = ssub.s32 128, 128
      %15 = vsyncadd [#allocation5], %s14
      %s17 = sshll.u32 [#allocation4], 4
      %s18 = int_to_ptr.vmem [resolvable:$true] %s17
      %20 = dma.hbm_to_vmem [thread:$0]  %s0, 128, %s18, [#allocation5]
    $region5: #{tpu_custom_call.1} parent=1 // pred_fallthru
      _
    // Predicated region
    $region6: #{tpu_custom_call.1} parent=1 // pred_check
      _
    $region7: #{tpu_custom_call.1} parent=1 // pred_check_branch
      %22 = sbr.rel (0) target = $region9
    $region8: #{tpu_custom_call.1} parent=1 // pred_region
      _
    $region9: #{tpu_custom_call.1} parent=1 // pred_fallthru
      _
    // Predicated region
    $region10: #{tpu_custom_call.1} parent=1 // pred_check
      _
    $region11: #{tpu_custom_call.1} parent=1 // pred_check_branch
      %24 = sbr.rel (0) target = $region13
    $region12: #{tpu_custom_call.1} parent=1 // pred_region
      _
    $region13: #{tpu_custom_call.1} parent=1 // pred_fallthru
      _
    // Predicated region
    $region14: #{tpu_custom_call.1} parent=1 // pred_check
      _
    $region15: #{tpu_custom_call.1} parent=1 // pred_check_branch
      %26 = sbr.rel (0) target = $region17
    $region16: #{tpu_custom_call.1} parent=1 // pred_region
      %27 = dma.done [#allocation5], 128
    $region17: #{tpu_custom_call.1} parent=1 // pred_fallthru
      _
    %p28 = scmp.eq.s32.totalorder 0, 0
    // Predicated region
    $region18: #{tpu_custom_call.1} parent=1 // pred_check
      %p29 = pneg %p28
    $region19: #{tpu_custom_call.1} parent=1 // pred_check_branch
      %31 = sbr.rel (%p29) target = $region21
    $region20: #{tpu_custom_call.1} parent=1 // pred_region
      %vm32 = vcmask 57344
      %33 = vst.msk [vmem:[#allocation2] sm:$0x1] %vm32, 0.0
    $region21: #{tpu_custom_call.1} parent=1 // pred_fallthru
      _
    %v34 = vld [vmem:[#allocation4] sm:$0xff]
    %v35 = vld [vmem:[%s1] sm:$0x1]
    %v37 = vlaneseq
    %v38 = vshrl.u32 %v37, 7
    %v39 = vsub.s32 0, %v38
    %v40 = vrot.slane %v35, %v39
    %v42 = vmul.f32 %v34, %v40
    %vm43 = vcmask 261120
    %v44 = vsel %vm43, %v42, 0.0
    %45 = vadd.xlane.f32.xlu0 %v44
    %v46 = vpop.xlane.xlu0 %45
    %v47 = vld [vmem:[#allocation2] sm:$0x1]
    %v49 = vlaneseq
    %v50 = vshrl.u32 %v49, 7
    %v51 = vsub.s32 0, %v50
    %v52 = vrot.slane %v46, %v51
    %v53 = vlaneseq
    %v54 = vshrl.u32 %v53, 7
    %v55 = vsub.s32 1, %v54
    %v56 = vrot.slane %v46, %v55
    %v57 = vlaneseq
    %v58 = vshrl.u32 %v57, 7
    %v59 = vsub.s32 2, %v58
    %v60 = vrot.slane %v46, %v59
    %v61 = vlaneseq
    %v62 = vshrl.u32 %v61, 7
    %v63 = vsub.s32 3, %v62
    %v64 = vrot.slane %v46, %v63
    %v65 = vlaneseq
    %v66 = vshrl.u32 %v65, 7
    %v67 = vsub.s32 4, %v66
    %v68 = vrot.slane %v46, %v67
    %v69 = vlaneseq
    %v70 = vshrl.u32 %v69, 7
    %v71 = vsub.s32 5, %v70
    %v72 = vrot.slane %v46, %v71
    %v73 = vlaneseq
    %v74 = vshrl.u32 %v73, 7
    %v75 = vsub.s32 6, %v74
    %v76 = vrot.slane %v46, %v75
    %v77 = vlaneseq
    %v78 = vshrl.u32 %v77, 7
    %v79 = vsub.s32 7, %v78
    %v80 = vrot.slane %v46, %v79
    %v81 = vcombine.low %v52, %v56
    %v82 = vcombine.low %v60, %v64
    %v83 = vcombine.low %v68, %v72
    %v84 = vcombine.low %v76, %v80
    %v86 = vunpack.c.l.s4 1966171168
    %v87 = vunpack.c.0.s8 %v86
    %v88 = vlaneseq
    %v89 = vshrl.u32 %v88, 7
    %v90 = vsub.s32 %v87, %v89
    %v91 = vrot.slane %v81, %v90
    %v93 = vunpack.c.l.s4 1966171168
    %v94 = vunpack.c.0.s8 %v93
    %v95 = vlaneseq
    %v96 = vshrl.u32 %v95, 7
    %v97 = vsub.s32 %v94, %v96
    %v98 = vrot.slane %v82, %v97
    %v100 = vunpack.c.l.s4 1966171168
    %v101 = vunpack.c.0.s8 %v100
    %v102 = vlaneseq
    %v103 = vshrl.u32 %v102, 7
    %v104 = vsub.s32 %v101, %v103
    %v105 = vrot.slane %v83, %v104
    %v107 = vunpack.c.l.s4 1966171168
    %v108 = vunpack.c.0.s8 %v107
    %v109 = vlaneseq
    %v110 = vshrl.u32 %v109, 7
    %v111 = vsub.s32 %v108, %v110
    %v112 = vrot.slane %v84, %v111
    %v113 = vcombine.low %v91, %v98
    %v114 = vcombine.low %v105, %v112
    %v116 = vunpack.c.l.s4 1966171168
    %v117 = vunpack.c.0.s8 %v116
    %v118 = vlaneseq
    %v119 = vshrl.u32 %v118, 7
    %v120 = vsub.s32 %v117, %v119
    %v121 = vrot.slane %v113, %v120
    %v123 = vunpack.c.l.s4 1966171168
    %v124 = vunpack.c.0.s8 %v123
    %v125 = vlaneseq
    %v126 = vshrl.u32 %v125, 7
    %v127 = vsub.s32 %v124, %v126
    %v128 = vrot.slane %v114, %v127
    %v129 = vcombine.low %v121, %v128
    %130 = vset.pattern.permute.xlu0 0
    %131 = vperm.xlu0 %130, %v129
    %v132 = vpop.permute.xlu0 %131
    %v133 = vlaneseq
    %v134 = vand.u32 %v133, 127
    %v135 = vlaneseq
    %v136 = vshrl.u32 %v135, 7
    %v137 = vsub.s32 %v134, %v136
    %v138 = vrot.slane %v132, %v137
    %v140 = vunpack.c.l.s4 1966171168
    %v141 = vunpack.c.0.s8 %v140
    %v142 = vlaneseq
    %v143 = vshrl.u32 %v142, 7
    %v144 = vsub.s32 %v141, %v143
    %v145 = vrot.slane %v138, %v144
    %v147 = vunpack.c.l.s4 1966171168
    %v148 = vunpack.c.0.s8 %v147
    %v149 = vlaneseq
    %v150 = vshrl.u32 %v149, 7
    %v151 = vsub.s32 %v148, %v150
    %v152 = vrot.slane %v145, %v151
    %v154 = vadd.f32 %v47, %v152
    %vm155 = vcmask 57344
    %156 = vst.msk [vmem:[#allocation2] sm:$0x1] %vm155, %v154
    // Predicated region
    $region22: #{tpu_custom_call.1} parent=1 // pred_check
      %p157 = pneg %p28
    $region23: #{tpu_custom_call.1} parent=1 // pred_check_branch
      %159 = sbr.rel (%p157) target = $region25
    $region24: #{tpu_custom_call.1} parent=1 // pred_region
      %v160 = vld [vmem:[#allocation2] sm:$0x1]
      %s161 = sld [smem:[#allocation3]]
      %v162 = vstv %s161
      %v163 = vadd.f32 %v160, %v162
      %164 = vst.msk [vmem:[#allocation7] sm:$0x1] %vm155, %v163
    $region25: #{tpu_custom_call.1} parent=1 // pred_fallthru
      _
    // Predicated region
    $region26: #{tpu_custom_call.1} parent=1 // pred_check
      _
    $region27: #{tpu_custom_call.1} parent=1 // pred_check_branch
      %166 = sbr.rel (0) target = $region29
    $region28: #{tpu_custom_call.1} parent=1 // pred_region
      %s168 = ssub.s32 16, 16
      %169 = vsyncadd [#allocation6], %s168
      %s171 = sshll.u32 [#allocation7], 4
      %s172 = int_to_ptr.vmem [resolvable:$true] %s171
      %174 = dma.vmem_to_hbm [thread:$0]  %s172, 16, %s3, [#allocation6]
    $region29: #{tpu_custom_call.1} parent=1 // pred_fallthru
      _
    // Predicated region
    $region30: #{tpu_custom_call.1} parent=1 // pred_check
      _
    $region31: #{tpu_custom_call.1} parent=1 // pred_check_branch
      %176 = sbr.rel (0) target = $region33
    $region32: #{tpu_custom_call.1} parent=1 // pred_region
      %177 = dma.done [#allocation6], 16
    $region33: #{tpu_custom_call.1} parent=1 // pred_fallthru
      _
    %178 = vsyncpa [#allocation5], 1
    %179 = vsyncpa [#allocation6], 1

</llo_original>
